<compile_context>
chip_gen: v7x
topology: tpu7x:2x2x1
jax: 0.10.0
libtpu: 0.0.40
codegen_flags: <defaults>
</compile_context>

<pallas_src>
import math

import jax
import jax.numpy as jnp
from jax.experimental import pallas as pl
from jax.experimental.pallas import tpu as pltpu


def _qnet_td3_kernel(x_ref, a_ref, w1x_ref, w1a_ref, b1_ref,
                     w2_ref, b2_ref, w3_ref, b3_ref, o_ref):
    # Layer 1: split matmul replaces cat([x, a], 1) @ W1.  bf16 MXU operands,
    # f32 accumulation; bias+ReLU+cast fused so only the bf16 h1 is kept.
    xb = x_ref[...].astype(jnp.bfloat16)
    ab = a_ref[...].astype(jnp.bfloat16)
    acc1 = jnp.dot(xb, w1x_ref[...], preferred_element_type=jnp.float32)
    acc1 = acc1 + jnp.dot(ab, w1a_ref[...], preferred_element_type=jnp.float32)
    h1 = jnp.maximum(acc1 + b1_ref[...], 0.0).astype(jnp.bfloat16)

    # Layer 2: Linear + ReLU (f32 result feeds the f32 output layer).
    acc2 = jnp.dot(h1, w2_ref[...], preferred_element_type=jnp.float32)
    h2 = jnp.maximum(acc2 + b2_ref[...], 0.0)

    # Output layer: H -> 1.  VPU multiply + XLU lane reduction instead of a
    # badly shaped N=1 MXU matmul; kept fully in f32.
    q = jnp.sum(h2 * w3_ref[...], axis=-1, keepdims=True) + b3_ref[...]
    o_ref[...] = q.astype(o_ref.dtype)


def _pick_batch_tile(B, block_b):
    """Choose the per-step batch tile (multiple of 8, or the full batch)."""
    block_b = max(8, min(int(block_b), 2048))  # VMEM-safe ceiling on all gens
    block_b = (block_b // 8) * 8
    if B <= 16:
        return B                      # tiny batch: one block (== full dim, legal)
    if B > block_b:
        return block_b                # big batch: fixed tiles, partial tail block
    # Moderate batch that fits one tile: still split in two so both v7x TCs
    # get a grid step.  Round the half-tile up to a sublane multiple.
    half = -(-B // 2)
    return -(-half // 8) * 8


def qnetwork_td3_forward(x, a, params, block_b=1024):
    """x: (B, obs_dim) f32, a: (B, act_dim) f32 -> (B, 1) f32 Q-values."""
    w1x, w1a, b1 = params["w1x"], params["w1a"], params["b1"]
    w2, b2 = params["w2"], params["b2"]
    w3, b3 = params["w3"], params["b3"]

    B, obs_dim = x.shape
    act_dim = a.shape[1]
    H = w2.shape[0]

    tb = _pick_batch_tile(B, block_b)
    n_blk = pl.cdiv(B, tb)            # no padding: last block over-runs, stores masked

    flops = 2 * B * ((obs_dim + act_dim) * H + H * H + H)
    bytes_accessed = (B * (obs_dim + act_dim + 1) * 4 +
                      (w1x.size + w1a.size + w2.size) * 2 +
                      (b1.size + b2.size + w3.size + b3.size) * 4)

    full = lambda i: (0, 0)           # weights/biases: same block every step
    rows = lambda i: (i, 0)           # x / a / out tiled along batch

    out = pl.pallas_call(
        _qnet_td3_kernel,
        out_shape=jax.ShapeDtypeStruct((B, 1), jnp.float32),
        grid=(n_blk,),
        in_specs=[
            pl.BlockSpec((tb, obs_dim), rows),   # x
            pl.BlockSpec((tb, act_dim), rows),   # a
            pl.BlockSpec((obs_dim, H), full),    # w1x (bf16)
            pl.BlockSpec((act_dim, H), full),    # w1a (bf16)
            pl.BlockSpec((1, H), full),          # b1  (f32)
            pl.BlockSpec((H, H), full),          # w2  (bf16)
            pl.BlockSpec((1, H), full),          # b2  (f32)
            pl.BlockSpec((1, H), full),          # w3  (f32, row layout)
            pl.BlockSpec((1, 1), full),          # b3  (f32)
        ],
        out_specs=pl.BlockSpec((tb, 1), rows),
        compiler_params=pltpu.CompilerParams(
            dimension_semantics=("parallel",)),
        cost_estimate=pl.CostEstimate(
            flops=flops, transcendentals=0, bytes_accessed=bytes_accessed),
    )(x, a, w1x, w1a, b1, w2, b2, w3, b3)
    return out


def init_params(key, obs_dim, act_dim, hidden=256):
    """PyTorch-Linear-style init (uniform +-1/sqrt(fan_in)).

    Weights are stored (in, out) — transposed vs torch.  W1 is pre-split into
    the x-rows (w1x) and a-rows (w1a) so the kernel never materializes
    cat([x, a], 1).  w1x/w1a/w2 are bf16 (MXU operands); w3 is kept f32 and
    stored as a (1, H) row for the VPU reduce output layer."""
    def linear(k, fan_in, fan_out):
        kw, kb = jax.random.split(k)
        bound = 1.0 / math.sqrt(fan_in)
        w = jax.random.uniform(kw, (fan_in, fan_out), jnp.float32,
                               -bound, bound)
        b = jax.random.uniform(kb, (1, fan_out), jnp.float32, -bound, bound)
        return w, b

    k1, k2, k3 = jax.random.split(key, 3)
    in_dim = obs_dim + act_dim
    w1, b1 = linear(k1, in_dim, hidden)
    w2, b2 = linear(k2, hidden, hidden)
    w3, b3 = linear(k3, hidden, 1)
    return dict(
        w1x=w1[:obs_dim].astype(jnp.bfloat16),
        w1a=w1[obs_dim:].astype(jnp.bfloat16),
        b1=b1,
        w2=w2.astype(jnp.bfloat16), b2=b2,
        w3=w3.T,                      # (1, H) f32
        b3=b3,                        # (1, 1) f32
    )


def qnetwork_td3_ref(x, a, p):
    """Pure-JAX reference with identical bf16-operand / f32-accum numerics."""
    xb = x.astype(jnp.bfloat16)
    ab = a.astype(jnp.bfloat16)
    h1 = (jnp.dot(xb, p["w1x"], preferred_element_type=jnp.float32) +
          jnp.dot(ab, p["w1a"], preferred_element_type=jnp.float32) + p["b1"])
    h1 = jnp.maximum(h1, 0.0).astype(jnp.bfloat16)
    h2 = jnp.dot(h1, p["w2"], preferred_element_type=jnp.float32) + p["b2"]
    h2 = jnp.maximum(h2, 0.0)
    return jnp.sum(h2 * p["w3"], axis=-1, keepdims=True) + p["b3"]


if __name__ == "__main__":
    key = jax.random.PRNGKey(0)
    kx, ka, kp = jax.random.split(key, 3)

    obs_dim, act_dim = 8, 2
    params = init_params(kp, obs_dim, act_dim, hidden=256)

    # (batch, block_b) cases: tiny single block; moderate batch split in two;
    # non-multiple-of-8 batch with a partial (unpadded) tail block.
    for batch, blk in ((2, 1024), (20, 1024), (37, 16)):
        xb = jax.random.normal(kx, (batch, obs_dim), jnp.float32)
        ab = jax.random.normal(ka, (batch, act_dim), jnp.float32)
        out = qnetwork_td3_forward(xb, ab, params, block_b=blk)
        out = jax.block_until_ready(out)
        ref = qnetwork_td3_ref(xb, ab, params)
        assert out.shape == (batch, 1), out.shape
        assert jnp.allclose(out, ref, atol=2e-3, rtol=2e-3), (batch, out, ref)

    print("KERNEL_OK")
</pallas_src>

<mosaic_0001>
module attributes {stable_mosaic.version = 11 : i64} {
  func.func @_qnet_td3_kernel(%arg0: i32, %arg1: memref<2x8xf32, #tpu.memory_space<vmem>>, %arg2: memref<2x2xf32, #tpu.memory_space<vmem>>, %arg3: memref<8x256xbf16, #tpu.memory_space<vmem>>, %arg4: memref<2x256xbf16, #tpu.memory_space<vmem>>, %arg5: memref<1x256xf32, #tpu.memory_space<vmem>>, %arg6: memref<256x256xbf16, #tpu.memory_space<vmem>>, %arg7: memref<1x256xf32, #tpu.memory_space<vmem>>, %arg8: memref<1x256xf32, #tpu.memory_space<vmem>>, %arg9: memref<1x1xf32, #tpu.memory_space<vmem>>, %arg10: memref<2x1xf32, #tpu.memory_space<vmem>>) attributes {dimension_semantics = [#tpu.dimension_semantics<parallel>], iteration_bounds = array<i64: 1>, scalar_prefetch = 0 : i64, scratch_operands = 0 : i64, tpu.core_type = #tpu.core_type<tc>, window_params = [{transform_indices = @transform_0, window_bounds = array<i64: 2, 8>}, {transform_indices = @transform_1, window_bounds = array<i64: 2, 2>}, {pipeline_mode = #tpu.pipeline_mode<synchronous>, transform_indices = @transform_2, window_bounds = array<i64: 8, 256>}, {pipeline_mode = #tpu.pipeline_mode<synchronous>, transform_indices = @transform_3, window_bounds = array<i64: 2, 256>}, {pipeline_mode = #tpu.pipeline_mode<synchronous>, transform_indices = @transform_4, window_bounds = array<i64: 1, 256>}, {pipeline_mode = #tpu.pipeline_mode<synchronous>, transform_indices = @transform_5, window_bounds = array<i64: 256, 256>}, {pipeline_mode = #tpu.pipeline_mode<synchronous>, transform_indices = @transform_6, window_bounds = array<i64: 1, 256>}, {pipeline_mode = #tpu.pipeline_mode<synchronous>, transform_indices = @transform_7, window_bounds = array<i64: 1, 256>}, {pipeline_mode = #tpu.pipeline_mode<synchronous>, transform_indices = @transform_8, window_bounds = array<i64: 1, 1>}, {transform_indices = @transform_9, window_bounds = array<i64: 2, 1>}]} {
    %c0 = arith.constant 0 : index
    %c0_0 = arith.constant 0 : index
    %0 = vector.load %arg1[%c0, %c0_0] : memref<2x8xf32, #tpu.memory_space<vmem>>, vector<2x8xf32>
    %1 = arith.truncf %0 : vector<2x8xf32> to vector<2x8xbf16>
    %c0_1 = arith.constant 0 : index
    %c0_2 = arith.constant 0 : index
    %2 = vector.load %arg2[%c0_1, %c0_2] : memref<2x2xf32, #tpu.memory_space<vmem>>, vector<2x2xf32>
    %3 = arith.truncf %2 : vector<2x2xf32> to vector<2x2xbf16>
    %c0_3 = arith.constant 0 : index
    %c0_4 = arith.constant 0 : index
    %4 = vector.load %arg3[%c0_3, %c0_4] : memref<8x256xbf16, #tpu.memory_space<vmem>>, vector<8x256xbf16>
    %cst = arith.constant dense<0.000000e+00> : vector<2x256xf32>
    %5 = tpu.matmul %1, %4, %cst {dimension_numbers = #tpu.dot_dimension_numbers<[1], [0], [0], [1], [0, 0, 1, 1], [], []>} : vector<2x8xbf16>, vector<8x256xbf16>, vector<2x256xf32> -> vector<2x256xf32>
    %c0_5 = arith.constant 0 : index
    %c0_6 = arith.constant 0 : index
    %6 = vector.load %arg4[%c0_5, %c0_6] : memref<2x256xbf16, #tpu.memory_space<vmem>>, vector<2x256xbf16>
    %cst_7 = arith.constant dense<0.000000e+00> : vector<2x256xf32>
    %7 = tpu.matmul %3, %6, %cst_7 {dimension_numbers = #tpu.dot_dimension_numbers<[1], [0], [0], [1], [0, 0, 1, 1], [], []>} : vector<2x2xbf16>, vector<2x256xbf16>, vector<2x256xf32> -> vector<2x256xf32>
    %8 = arith.addf %5, %7 : vector<2x256xf32>
    %c0_8 = arith.constant 0 : index
    %c0_9 = arith.constant 0 : index
    %9 = vector.load %arg5[%c0_8, %c0_9] : memref<1x256xf32, #tpu.memory_space<vmem>>, vector<1x256xf32>
    %10 = vector.broadcast %9 : vector<1x256xf32> to vector<2x256xf32>
    %11 = arith.addf %8, %10 : vector<2x256xf32>
    %cst_10 = arith.constant 0.000000e+00 : f32
    %12 = vector.broadcast %cst_10 : f32 to vector<2x256xf32>
    %13 = arith.maximumf %11, %12 : vector<2x256xf32>
    %14 = arith.truncf %13 : vector<2x256xf32> to vector<2x256xbf16>
    %c0_11 = arith.constant 0 : index
    %c0_12 = arith.constant 0 : index
    %15 = vector.load %arg6[%c0_11, %c0_12] : memref<256x256xbf16, #tpu.memory_space<vmem>>, vector<256x256xbf16>
    %cst_13 = arith.constant dense<0.000000e+00> : vector<2x256xf32>
    %16 = tpu.matmul %14, %15, %cst_13 {dimension_numbers = #tpu.dot_dimension_numbers<[1], [0], [0], [1], [0, 0, 1, 1], [], []>} : vector<2x256xbf16>, vector<256x256xbf16>, vector<2x256xf32> -> vector<2x256xf32>
    %c0_14 = arith.constant 0 : index
    %c0_15 = arith.constant 0 : index
    %17 = vector.load %arg7[%c0_14, %c0_15] : memref<1x256xf32, #tpu.memory_space<vmem>>, vector<1x256xf32>
    %18 = vector.broadcast %17 : vector<1x256xf32> to vector<2x256xf32>
    %19 = arith.addf %16, %18 : vector<2x256xf32>
    %cst_16 = arith.constant 0.000000e+00 : f32
    %20 = vector.broadcast %cst_16 : f32 to vector<2x256xf32>
    %21 = arith.maximumf %19, %20 : vector<2x256xf32>
    %c0_17 = arith.constant 0 : index
    %c0_18 = arith.constant 0 : index
    %22 = vector.load %arg8[%c0_17, %c0_18] : memref<1x256xf32, #tpu.memory_space<vmem>>, vector<1x256xf32>
    %23 = vector.broadcast %22 : vector<1x256xf32> to vector<2x256xf32>
    %24 = arith.mulf %21, %23 : vector<2x256xf32>
    %cst_19 = arith.constant dense<0.000000e+00> : vector<2xf32>
    %25 = vector.multi_reduction <add>, %24, %cst_19 [1] : vector<2x256xf32> to vector<2xf32>
    %26 = vector.shape_cast %25 : vector<2xf32> to vector<2x1xf32>
    %c0_20 = arith.constant 0 : index
    %c0_21 = arith.constant 0 : index
    %27 = vector.load %arg9[%c0_20, %c0_21] : memref<1x1xf32, #tpu.memory_space<vmem>>, vector<1x1xf32>
    %28 = vector.broadcast %27 : vector<1x1xf32> to vector<2x1xf32>
    %29 = arith.addf %26, %28 : vector<2x1xf32>
    %c0_22 = arith.constant 0 : index
    %c0_23 = arith.constant 0 : index
    %30 = vector.load %arg10[%c0_22, %c0_23] : memref<2x1xf32, #tpu.memory_space<vmem>>, vector<2x1xf32>
    tpu.vector_store %arg10[%c0_22, %c0_23], %29 {strides = array<i32>} : memref<2x1xf32, #tpu.memory_space<vmem>>, vector<2x1xf32>,
    return
  }
  func.func @transform_0(%arg0: i32) -> (i32, i32) {
    %c0_i32 = arith.constant 0 : i32
    %c0_i32_0 = arith.constant 0 : i32
    return %arg0, %c0_i32 : i32, i32
  }
  func.func @transform_1(%arg0: i32) -> (i32, i32) {
    %c0_i32 = arith.constant 0 : i32
    %c0_i32_0 = arith.constant 0 : i32
    return %arg0, %c0_i32 : i32, i32
  }
  func.func @transform_2(%arg0: i32) -> (i32, i32) {
    %c0_i32 = arith.constant 0 : i32
    %c0_i32_0 = arith.constant 0 : i32
    %c0_i32_1 = arith.constant 0 : i32
    return %c0_i32, %c0_i32_0 : i32, i32
  }
  func.func @transform_3(%arg0: i32) -> (i32, i32) {
    %c0_i32 = arith.constant 0 : i32
    %c0_i32_0 = arith.constant 0 : i32
    %c0_i32_1 = arith.constant 0 : i32
    return %c0_i32, %c0_i32_0 : i32, i32
  }
  func.func @transform_4(%arg0: i32) -> (i32, i32) {
    %c0_i32 = arith.constant 0 : i32
    %c0_i32_0 = arith.constant 0 : i32
    %c0_i32_1 = arith.constant 0 : i32
    return %c0_i32, %c0_i32_0 : i32, i32
  }
  func.func @transform_5(%arg0: i32) -> (i32, i32) {
    %c0_i32 = arith.constant 0 : i32
    %c0_i32_0 = arith.constant 0 : i32
    %c0_i32_1 = arith.constant 0 : i32
    return %c0_i32, %c0_i32_0 : i32, i32
  }
  func.func @transform_6(%arg0: i32) -> (i32, i32) {
    %c0_i32 = arith.constant 0 : i32
    %c0_i32_0 = arith.constant 0 : i32
    %c0_i32_1 = arith.constant 0 : i32
    return %c0_i32, %c0_i32_0 : i32, i32
  }
  func.func @transform_7(%arg0: i32) -> (i32, i32) {
    %c0_i32 = arith.constant 0 : i32
    %c0_i32_0 = arith.constant 0 : i32
    %c0_i32_1 = arith.constant 0 : i32
    return %c0_i32, %c0_i32_0 : i32, i32
  }
  func.func @transform_8(%arg0: i32) -> (i32, i32) {
    %c0_i32 = arith.constant 0 : i32
    %c0_i32_0 = arith.constant 0 : i32
    %c0_i32_1 = arith.constant 0 : i32
    return %c0_i32, %c0_i32_0 : i32, i32
  }
  func.func @transform_9(%arg0: i32) -> (i32, i32) {
    %c0_i32 = arith.constant 0 : i32
    %c0_i32_0 = arith.constant 0 : i32
    return %arg0, %c0_i32 : i32, i32
  }
}

</mosaic_0001>

<llo_original>
// kernel: tpu_custom_call.1
$region0: #{tpu_custom_call.1}
  #allocation0 [shape = 'u32[]', space=smem, size = 0x4, offset = 0x4, fixed_abs, tag = 'smem constant byte address 0x4 - core index']
  #allocation1 [shape = 'u32[144,128]{1,0:T(1,128)}', space=vmem, size = 0x12000, scoped, tag = 'internal scratch']
  #allocation2 [shape = 'f32[1,1]{1,0:T(1,128)S(1)}', space=vmem, size = 0x200, scoped, tag = 'scoped memory for tpu_custom_call.1']
  %s0 = inlined_call_operand.vmem [shape: f32[2,8], index: 0, kind: input, shape index: {}]
  %s1 = inlined_call_operand.hbm [shape: f32[2,2], index: 1, kind: input, shape index: {}]
  %s2 = inlined_call_operand.vmem [shape: bf16[8,256], index: 2, kind: input, shape index: {}]
  %s3 = inlined_call_operand.vmem [shape: bf16[2,256], index: 3, kind: input, shape index: {}]
  %s4 = inlined_call_operand.vmem [shape: f32[1,256], index: 4, kind: input, shape index: {}]
  %s5 = inlined_call_operand.hbm [shape: bf16[256,256], index: 5, kind: input, shape index: {}]
  %s6 = inlined_call_operand.vmem [shape: f32[1,256], index: 6, kind: input, shape index: {}]
  %s7 = inlined_call_operand.vmem [shape: f32[1,256], index: 7, kind: input, shape index: {}]
  %s8 = inlined_call_operand.<no memory space> [shape: f32[1,1], index: 8, kind: input, shape index: {}]
  %s9 = inlined_call_operand.vmem [shape: f32[2,1], index: 9, kind: output, shape index: {}]
  %s10 = sld [smem:[#allocation0]]
  $region54: #{tpu_custom_call.1} parent=0
    _
  %s12 = ssub.s32 1, %s10
  %s13 = scalar_select 0, %s12, %s10
  %v14 = vstv %s8
  %15 = vst [vmem:[#allocation2] sm:$0x1] %v14
  $region1: #{tpu_custom_call.1} parent=0
    #allocation3 [shape = 'u8[1024]{0}', space=vmem, size = 0x400, scoped, tag = 'input window, operand 1, single buffered']
    #allocation4 [shape = 's32[1]{0}', space=sflag, size = 0x4, scoped, tag = 'scoped memory for tpu_custom_call.1']
    #allocation5 [shape = 'u8[131072]{0}', space=vmem, size = 0x20000, scoped, tag = 'input window, operand 5, single buffered']
    #allocation6 [shape = 's32[1]{0}', space=sflag, size = 0x4, scoped, tag = 'scoped memory for tpu_custom_call.1']
    %16 = vsyncpa [#allocation4], 0
    %17 = vsyncpa [#allocation6], 0
    // Predicated region
    $region2: #{tpu_custom_call.1} parent=1 // pred_check
      _
    $region3: #{tpu_custom_call.1} parent=1 // pred_check_branch
      %19 = sbr.rel (0) target = $region5
    $region4: #{tpu_custom_call.1} parent=1 // pred_region
      _
    $region5: #{tpu_custom_call.1} parent=1 // pred_fallthru
      _
    // Predicated region
    $region6: #{tpu_custom_call.1} parent=1 // pred_check
      _
    $region7: #{tpu_custom_call.1} parent=1 // pred_check_branch
      %21 = sbr.rel (0) target = $region9
    $region8: #{tpu_custom_call.1} parent=1 // pred_region
      %s23 = ssub.s32 32, 32
      %24 = vsyncadd [#allocation4], %s23
      %s26 = sshll.u32 [#allocation3], 4
      %s27 = int_to_ptr.vmem [resolvable:$true] %s26
      %29 = dma.hbm_to_vmem [thread:$0]  %s1, 32, %s27, [#allocation4]
    $region9: #{tpu_custom_call.1} parent=1 // pred_fallthru
      _
    // Predicated region
    $region10: #{tpu_custom_call.1} parent=1 // pred_check
      _
    $region11: #{tpu_custom_call.1} parent=1 // pred_check_branch
      %31 = sbr.rel (0) target = $region13
    $region12: #{tpu_custom_call.1} parent=1 // pred_region
      _
    $region13: #{tpu_custom_call.1} parent=1 // pred_fallthru
      _
    // Predicated region
    $region14: #{tpu_custom_call.1} parent=1 // pred_check
      _
    $region15: #{tpu_custom_call.1} parent=1 // pred_check_branch
      %33 = sbr.rel (0) target = $region17
    $region16: #{tpu_custom_call.1} parent=1 // pred_region
      _
    $region17: #{tpu_custom_call.1} parent=1 // pred_fallthru
      _
    // Predicated region
    $region18: #{tpu_custom_call.1} parent=1 // pred_check
      _
    $region19: #{tpu_custom_call.1} parent=1 // pred_check_branch
      %35 = sbr.rel (0) target = $region21
    $region20: #{tpu_custom_call.1} parent=1 // pred_region
      _
    $region21: #{tpu_custom_call.1} parent=1 // pred_fallthru
      _
    // Predicated region
    $region22: #{tpu_custom_call.1} parent=1 // pred_check
      _
    $region23: #{tpu_custom_call.1} parent=1 // pred_check_branch
      %37 = sbr.rel (0) target = $region25
    $region24: #{tpu_custom_call.1} parent=1 // pred_region
      %s39 = ssub.s32 4096, 4096
      %40 = vsyncadd [#allocation6], %s39
      %s41 = sshll.u32 [#allocation5], 4
      %s42 = int_to_ptr.vmem [resolvable:$true] %s41
      %47 = dma.hbm_to_vmem [thread:$0]  %s5, 4096, %s42, [#allocation6], 128, 128, 8
    $region25: #{tpu_custom_call.1} parent=1 // pred_fallthru
      _
    // Predicated region
    $region26: #{tpu_custom_call.1} parent=1 // pred_check
      _
    $region27: #{tpu_custom_call.1} parent=1 // pred_check_branch
      %49 = sbr.rel (0) target = $region29
    $region28: #{tpu_custom_call.1} parent=1 // pred_region
      _
    $region29: #{tpu_custom_call.1} parent=1 // pred_fallthru
      _
    // Predicated region
    $region30: #{tpu_custom_call.1} parent=1 // pred_check
      _
    $region31: #{tpu_custom_call.1} parent=1 // pred_check_branch
      %51 = sbr.rel (0) target = $region33
    $region32: #{tpu_custom_call.1} parent=1 // pred_region
      _
    $region33: #{tpu_custom_call.1} parent=1 // pred_fallthru
      _
    // Predicated region
    $region34: #{tpu_custom_call.1} parent=1 // pred_check
      _
    $region35: #{tpu_custom_call.1} parent=1 // pred_check_branch
      %53 = sbr.rel (0) target = $region37
    $region36: #{tpu_custom_call.1} parent=1 // pred_region
      _
    $region37: #{tpu_custom_call.1} parent=1 // pred_fallthru
      _
    // Predicated region
    $region38: #{tpu_custom_call.1} parent=1 // pred_check
      _
    $region39: #{tpu_custom_call.1} parent=1 // pred_check_branch
      %55 = sbr.rel (0) target = $region41
    $region40: #{tpu_custom_call.1} parent=1 // pred_region
      %56 = dma.done [#allocation4], 32
    $region41: #{tpu_custom_call.1} parent=1 // pred_fallthru
      _
    // Predicated region
    $region42: #{tpu_custom_call.1} parent=1 // pred_check
      _
    $region43: #{tpu_custom_call.1} parent=1 // pred_check_branch
      %58 = sbr.rel (0) target = $region45
    $region44: #{tpu_custom_call.1} parent=1 // pred_region
      %59 = dma.done [#allocation6], 4096
    $region45: #{tpu_custom_call.1} parent=1 // pred_fallthru
      _
    %v61 = vld [vmem:[%s0] sm:$0x3]
    %v62 = vpack.c.bf16 %v61, %v61
    %v63 = vld [vmem:[#allocation3] sm:$0x3]
    %v64 = vpack.c.bf16 %v63, %v63
    %v65 = vld [vmem:[%s2] sm:$0xff]
    %v66 = vld [vmem:[%s3] sm:$0x3]
    %v69 = vunpack.c.l.s4 1966171168
    %v70 = vunpack.c.0.s8 %v69
    %v71 = vlaneseq
    %v72 = vshrl.u32 %v71, 7
    %v73 = vsub.s32 %v70, %v72
    %v74 = vrot.slane %v66, %v73
    %v75 = vcombine.high %v74, %v74
    %v77 = vunpack.c.l.s4 1966171168
    %v78 = vunpack.c.0.s8 %v77
    %v79 = vlaneseq
    %v80 = vshrl.u32 %v79, 7
    %v81 = vsub.s32 %v78, %v80
    %v82 = vrot.slane %v74, %v81
    %v84 = vunpack.c.l.s4 1966171168
    %v85 = vunpack.c.0.s8 %v84
    %v86 = vlaneseq
    %v87 = vshrl.u32 %v86, 7
    %v88 = vsub.s32 %v85, %v87
    %v89 = vrot.slane %v75, %v88
    %vm90 = vcmask 15360
    %v92 = vsel %vm90, %v64, 0
    %vm94 = vcmask 1040384
    %v96 = vsel %vm94, %v82, 0
    %v99 = vsel %vm94, %v89, 0
    %101 = vmatprep.subr.bf16.mxu0 %v99
    %102 = vmatpush1.bf16.msra.mxu0 %v96
    %103 = vmatprep.subr.bf16.mxu0 0
    %104 = vmatpush1.bf16.msra.mxu0 0
    %105 = vmatprep.subr.bf16.mxu0 0
    %106 = vmatpush1.bf16.msra.mxu0 0
    %107 = vmatprep.subr.bf16.mxu0 0
    %108 = vmatpush1.bf16.msra.mxu0 0
    %109 = vmatprep.subr.bf16.mxu0 0
    %110 = vmatpush1.bf16.msra.mxu0 0
    %111 = vmatprep.subr.bf16.mxu0 0
    %112 = vmatpush1.bf16.msra.mxu0 0
    %113 = vmatprep.subr.bf16.mxu0 0
    %114 = vmatpush1.bf16.msra.mxu0 0
    %115 = vmatprep.subr.bf16.mxu0 0
    %116 = vmatpush1.bf16.msra.mxu0 0
    %117 = vmatprep.subr.bf16.mxu0 0
    %118 = vmatpush1.bf16.msra.mxu0 0
    %119 = vmatprep.subr.bf16.mxu0 0
    %120 = vmatpush1.bf16.msra.mxu0 0
    %121 = vmatprep.subr.bf16.mxu0 0
    %122 = vmatpush1.bf16.msra.mxu0 0
    %123 = vmatprep.subr.bf16.mxu0 0
    %124 = vmatpush1.bf16.msra.mxu0 0
    %125 = vmatprep.subr.bf16.mxu0 0
    %126 = vmatpush1.bf16.msra.mxu0 0
    %127 = vmatprep.subr.bf16.mxu0 0
    %128 = vmatpush1.bf16.msra.mxu0 0
    %129 = vmatprep.subr.bf16.mxu0 0
    %130 = vmatpush1.bf16.msra.mxu0 0
    %131 = vmatprep.subr.bf16.mxu0 0
    %132 = vmatpush1.bf16.msra.mxu0 0
    %133 = vmatprep.mubr.bf16.mxu0 0
    %134 = vmatmul.mubr.bf16.gmra.mrb[0].mxu0 %v92
    %v135 = vpop.f32.mrb[0].mxu0
    %v136 = vadd.f32 0.0, %v135
    %v137 = vpop.f32.mrb[0].mxu0
    %v138 = vadd.f32 0.0, %v137
    %v139 = vpop.f32.mrb[0].mxu0
    %v140 = vpop.f32.mrb[0].mxu0
    %141 = vdwg.mxu0
    %v143 = vunpack.c.l.b16 %v65
    %v144 = vunpack.c.h.b16 %v65
    %v145 = vpack.c.b16 %v143, %v143
    %v146 = vpack.c.b16 %v144, %v144
    %vm147 = vcmask 64512
    %v149 = vsel %vm147, %v62, 0
    %vm151 = vcmask 1043456
    %v153 = vsel %vm151, %v145, 0
    %v156 = vsel %vm151, %v146, 0
    %158 = vmatprep.subr.bf16.mxu0 %v156
    %159 = vmatpush1.bf16.msra.mxu0 %v153
    %160 = vmatprep.subr.bf16.mxu0 0
    %161 = vmatpush1.bf16.msra.mxu0 0
    %162 = vmatprep.subr.bf16.mxu0 0
    %163 = vmatpush1.bf16.msra.mxu0 0
    %164 = vmatprep.subr.bf16.mxu0 0
    %165 = vmatpush1.bf16.msra.mxu0 0
    %166 = vmatprep.subr.bf16.mxu0 0
    %167 = vmatpush1.bf16.msra.mxu0 0
    %168 = vmatprep.subr.bf16.mxu0 0
    %169 = vmatpush1.bf16.msra.mxu0 0
    %170 = vmatprep.subr.bf16.mxu0 0
    %171 = vmatpush1.bf16.msra.mxu0 0
    %172 = vmatprep.subr.bf16.mxu0 0
    %173 = vmatpush1.bf16.msra.mxu0 0
    %174 = vmatprep.subr.bf16.mxu0 0
    %175 = vmatpush1.bf16.msra.mxu0 0
    %176 = vmatprep.subr.bf16.mxu0 0
    %177 = vmatpush1.bf16.msra.mxu0 0
    %178 = vmatprep.subr.bf16.mxu0 0
    %179 = vmatpush1.bf16.msra.mxu0 0
    %180 = vmatprep.subr.bf16.mxu0 0
    %181 = vmatpush1.bf16.msra.mxu0 0
    %182 = vmatprep.subr.bf16.mxu0 0
    %183 = vmatpush1.bf16.msra.mxu0 0
    %184 = vmatprep.subr.bf16.mxu0 0
    %185 = vmatpush1.bf16.msra.mxu0 0
    %186 = vmatprep.subr.bf16.mxu0 0
    %187 = vmatpush1.bf16.msra.mxu0 0
    %188 = vmatprep.subr.bf16.mxu0 0
    %189 = vmatpush1.bf16.msra.mxu0 0
    %190 = vmatprep.mubr.bf16.mxu0 0
    %191 = vmatmul.mubr.bf16.gmra.mrb[0].mxu0 %v149
    %v192 = vpop.f32.mrb[0].mxu0
    %v193 = vadd.f32 %v136, %v192
    %v194 = vpop.f32.mrb[0].mxu0
    %v195 = vadd.f32 %v138, %v194
    %v196 = vpop.f32.mrb[0].mxu0
    %v197 = vpop.f32.mrb[0].mxu0
    %198 = vdwg.mxu0
    %v199 = vld [vmem:[%s4] sm:$0x3]
    %v201 = vlaneseq
    %v202 = vshrl.u32 %v201, 7
    %v203 = vsub.s32 0, %v202
    %v204 = vrot.slane %v199, %v203
    %v205 = vlaneseq
    %v206 = vshrl.u32 %v205, 7
    %v207 = vsub.s32 1, %v206
    %v208 = vrot.slane %v199, %v207
    %v211 = vadd.f32 %v193, %v204
    %v212 = vadd.f32 %v195, %v208
    %v213 = vmax.f32 %v211, 0.0
    %v214 = vmax.f32 %v212, 0.0
    %v215 = vpack.c.bf16 %v213, %v213
    %v216 = vpack.c.bf16 %v214, %v214
    %v217 = vld [vmem:[#allocation5] sm:$0xff]
    %v218 = vld [vmem:[#allocation5 + $0x8] sm:$0xff]
    %v219 = vld [vmem:[#allocation5 + $0x10] sm:$0xff]
    %v220 = vld [vmem:[#allocation5 + $0x18] sm:$0xff]
    %v221 = vld [vmem:[#allocation5 + $0x20] sm:$0xff]
    %v222 = vld [vmem:[#allocation5 + $0x28] sm:$0xff]
    %v223 = vld [vmem:[#allocation5 + $0x30] sm:$0xff]
    %v224 = vld [vmem:[#allocation5 + $0x38] sm:$0xff]
    %v225 = vld [vmem:[#allocation5 + $0x40] sm:$0xff]
    %v226 = vld [vmem:[#allocation5 + $0x48] sm:$0xff]
    %v227 = vld [vmem:[#allocation5 + $0x50] sm:$0xff]
    %v228 = vld [vmem:[#allocation5 + $0x58] sm:$0xff]
    %v229 = vld [vmem:[#allocation5 + $0x60] sm:$0xff]
    %v230 = vld [vmem:[#allocation5 + $0x68] sm:$0xff]
    %v231 = vld [vmem:[#allocation5 + $0x70] sm:$0xff]
    %v232 = vld [vmem:[#allocation5 + $0x78] sm:$0xff]
    %v233 = vld [vmem:[#allocation5 + $0x80] sm:$0xff]
    %v234 = vld [vmem:[#allocation5 + $0x88] sm:$0xff]
    %v235 = vld [vmem:[#allocation5 + $0x90] sm:$0xff]
    %v236 = vld [vmem:[#allocation5 + $0x98] sm:$0xff]
    %v237 = vld [vmem:[#allocation5 + $0xa0] sm:$0xff]
    %v238 = vld [vmem:[#allocation5 + $0xa8] sm:$0xff]
    %v239 = vld [vmem:[#allocation5 + $0xb0] sm:$0xff]
    %v240 = vld [vmem:[#allocation5 + $0xb8] sm:$0xff]
    %v241 = vld [vmem:[#allocation5 + $0xc0] sm:$0xff]
    %v242 = vld [vmem:[#allocation5 + $0xc8] sm:$0xff]
    %v243 = vld [vmem:[#allocation5 + $0xd0] sm:$0xff]
    %v244 = vld [vmem:[#allocation5 + $0xd8] sm:$0xff]
    %v245 = vld [vmem:[#allocation5 + $0xe0] sm:$0xff]
    %v246 = vld [vmem:[#allocation5 + $0xe8] sm:$0xff]
    %v247 = vld [vmem:[#allocation5 + $0xf0] sm:$0xff]
    %v248 = vld [vmem:[#allocation5 + $0xf8] sm:$0xff]
    %v249 = vld [vmem:[%s6] sm:$0x3]
    %v251 = vlaneseq
    %v252 = vshrl.u32 %v251, 7
    %v253 = vsub.s32 0, %v252
    %v254 = vrot.slane %v249, %v253
    %v255 = vlaneseq
    %v256 = vshrl.u32 %v255, 7
    %v257 = vsub.s32 1, %v256
    %v258 = vrot.slane %v249, %v257
    %v293 = vunpack.c.l.b16 %v217
    %v294 = vunpack.c.h.b16 %v217
    %v295 = vunpack.c.l.b16 %v218
    %v296 = vunpack.c.h.b16 %v218
    %v297 = vunpack.c.l.b16 %v219
    %v298 = vunpack.c.h.b16 %v219
    %v299 = vunpack.c.l.b16 %v220
    %v300 = vunpack.c.h.b16 %v220
    %v301 = vunpack.c.l.b16 %v221
    %v302 = vunpack.c.h.b16 %v221
    %v303 = vunpack.c.l.b16 %v222
    %v304 = vunpack.c.h.b16 %v222
    %v305 = vunpack.c.l.b16 %v223
    %v306 = vunpack.c.h.b16 %v223
    %v307 = vunpack.c.l.b16 %v224
    %v308 = vunpack.c.h.b16 %v224
    %v309 = vunpack.c.l.b16 %v225
    %v310 = vunpack.c.h.b16 %v225
    %v311 = vunpack.c.l.b16 %v226
    %v312 = vunpack.c.h.b16 %v226
    %v313 = vunpack.c.l.b16 %v227
    %v314 = vunpack.c.h.b16 %v227
    %v315 = vunpack.c.l.b16 %v228
    %v316 = vunpack.c.h.b16 %v228
    %v317 = vunpack.c.l.b16 %v229
    %v318 = vunpack.c.h.b16 %v229
    %v319 = vunpack.c.l.b16 %v230
    %v320 = vunpack.c.h.b16 %v230
    %v321 = vunpack.c.l.b16 %v231
    %v322 = vunpack.c.h.b16 %v231
    %v323 = vunpack.c.l.b16 %v232
    %v324 = vunpack.c.h.b16 %v232
    %v325 = vunpack.c.l.b16 %v233
    %v326 = vunpack.c.h.b16 %v233
    %v327 = vunpack.c.l.b16 %v234
    %v328 = vunpack.c.h.b16 %v234
    %v329 = vunpack.c.l.b16 %v235
    %v330 = vunpack.c.h.b16 %v235
    %v331 = vunpack.c.l.b16 %v236
    %v332 = vunpack.c.h.b16 %v236
    %v333 = vunpack.c.l.b16 %v237
    %v334 = vunpack.c.h.b16 %v237
    %v335 = vunpack.c.l.b16 %v238
    %v336 = vunpack.c.h.b16 %v238
    %v337 = vunpack.c.l.b16 %v239
    %v338 = vunpack.c.h.b16 %v239
    %v339 = vunpack.c.l.b16 %v240
    %v340 = vunpack.c.h.b16 %v240
    %v341 = vunpack.c.l.b16 %v241
    %v342 = vunpack.c.h.b16 %v241
    %v343 = vunpack.c.l.b16 %v242
    %v344 = vunpack.c.h.b16 %v242
    %v345 = vunpack.c.l.b16 %v243
    %v346 = vunpack.c.h.b16 %v243
    %v347 = vunpack.c.l.b16 %v244
    %v348 = vunpack.c.h.b16 %v244
    %v349 = vunpack.c.l.b16 %v245
    %v350 = vunpack.c.h.b16 %v245
    %v351 = vunpack.c.l.b16 %v246
    %v352 = vunpack.c.h.b16 %v246
    %v353 = vunpack.c.l.b16 %v247
    %v354 = vunpack.c.h.b16 %v247
    %v355 = vunpack.c.l.b16 %v248
    %v356 = vunpack.c.h.b16 %v248
    %v357 = vpack.c.b16 %v295, %v293
    %v358 = vpack.c.b16 %v296, %v294
    %v359 = vpack.c.b16 %v299, %v297
    %v360 = vpack.c.b16 %v300, %v298
    %v361 = vpack.c.b16 %v303, %v301
    %v362 = vpack.c.b16 %v304, %v302
    %v363 = vpack.c.b16 %v307, %v305
    %v364 = vpack.c.b16 %v308, %v306
    %v365 = vpack.c.b16 %v311, %v309
    %v366 = vpack.c.b16 %v312, %v310
    %v367 = vpack.c.b16 %v315, %v313
    %v368 = vpack.c.b16 %v316, %v314
    %v369 = vpack.c.b16 %v319, %v317
    %v370 = vpack.c.b16 %v320, %v318
    %v371 = vpack.c.b16 %v323, %v321
    %v372 = vpack.c.b16 %v324, %v322
    %v373 = vpack.c.b16 %v327, %v325
    %v374 = vpack.c.b16 %v328, %v326
    %v375 = vpack.c.b16 %v331, %v329
    %v376 = vpack.c.b16 %v332, %v330
    %v377 = vpack.c.b16 %v335, %v333
    %v378 = vpack.c.b16 %v336, %v334
    %v379 = vpack.c.b16 %v339, %v337
    %v380 = vpack.c.b16 %v340, %v338
    %v381 = vpack.c.b16 %v343, %v341
    %v382 = vpack.c.b16 %v344, %v342
    %v383 = vpack.c.b16 %v347, %v345
    %v384 = vpack.c.b16 %v348, %v346
    %v385 = vpack.c.b16 %v351, %v349
    %v386 = vpack.c.b16 %v352, %v350
    %v387 = vpack.c.b16 %v355, %v353
    %v388 = vpack.c.b16 %v356, %v354
    %421 = vmatprep.subr.bf16.mxu0 %v358
    %422 = vmatpush1.bf16.msra.mxu0 %v357
    %423 = vmatprep.subr.bf16.mxu0 %v360
    %424 = vmatpush1.bf16.msra.mxu0 %v359
    %425 = vmatprep.subr.bf16.mxu0 %v362
    %426 = vmatpush1.bf16.msra.mxu0 %v361
    %427 = vmatprep.subr.bf16.mxu0 %v364
    %428 = vmatpush1.bf16.msra.mxu0 %v363
    %429 = vmatprep.subr.bf16.mxu0 %v366
    %430 = vmatpush1.bf16.msra.mxu0 %v365
    %431 = vmatprep.subr.bf16.mxu0 %v368
    %432 = vmatpush1.bf16.msra.mxu0 %v367
    %433 = vmatprep.subr.bf16.mxu0 %v370
    %434 = vmatpush1.bf16.msra.mxu0 %v369
    %435 = vmatprep.subr.bf16.mxu0 %v372
    %436 = vmatpush1.bf16.msra.mxu0 %v371
    %437 = vmatprep.subr.bf16.mxu0 %v374
    %438 = vmatpush1.bf16.msra.mxu0 %v373
    %439 = vmatprep.subr.bf16.mxu0 %v376
    %440 = vmatpush1.bf16.msra.mxu0 %v375
    %441 = vmatprep.subr.bf16.mxu0 %v378
    %442 = vmatpush1.bf16.msra.mxu0 %v377
    %443 = vmatprep.subr.bf16.mxu0 %v380
    %444 = vmatpush1.bf16.msra.mxu0 %v379
    %445 = vmatprep.subr.bf16.mxu0 %v382
    %446 = vmatpush1.bf16.msra.mxu0 %v381
    %447 = vmatprep.subr.bf16.mxu0 %v384
    %448 = vmatpush1.bf16.msra.mxu0 %v383
    %449 = vmatprep.subr.bf16.mxu0 %v386
    %450 = vmatpush1.bf16.msra.mxu0 %v385
    %451 = vmatprep.subr.bf16.mxu0 %v388
    %452 = vmatpush1.bf16.msra.mxu0 %v387
    %453 = vmatprep.mubr.bf16.mxu0 %v216
    %454 = vmatmul.mubr.bf16.gmra.mrb[0].mxu0 %v215
    %v455 = vpop.f32.mrb[0].mxu0
    %v456 = vadd.f32 %v254, %v455
    %v457 = vpop.f32.mrb[0].mxu0
    %v458 = vadd.f32 %v258, %v457
    %v459 = vpop.f32.mrb[0].mxu0
    %v460 = vpop.f32.mrb[0].mxu0
    %461 = vdwg.mxu0
    %v462 = vmax.f32 %v456, 0.0
    %v463 = vmax.f32 %v458, 0.0
    %v464 = vld [vmem:[%s7] sm:$0x3]
    %v466 = vlaneseq
    %v467 = vshrl.u32 %v466, 7
    %v468 = vsub.s32 0, %v467
    %v469 = vrot.slane %v464, %v468
    %v470 = vlaneseq
    %v471 = vshrl.u32 %v470, 7
    %v472 = vsub.s32 1, %v471
    %v473 = vrot.slane %v464, %v472
    %v476 = vmul.f32 %v462, %v469
    %v477 = vmul.f32 %v463, %v473
    %vm478 = vcmask 1041408
    %v479 = vsel %vm478, %v476, 0.0
    %v480 = vsel %vm478, %v477, 0.0
    %v481 = vadd.f32 %v479, %v480
    %482 = vadd.xlane.f32.xlu0 %v481
    %v483 = vpop.xlane.xlu0 %482
    %v484 = vld [vmem:[#allocation2] sm:$0x1]
    %v486 = vlaneseq
    %v487 = vshrl.u32 %v486, 7
    %v488 = vsub.s32 0, %v487
    %v489 = vrot.slane %v484, %v488
    %v491 = vadd.f32 %v483, %v489
    %vm492 = vcmask 1024
    %493 = vst.msk [vmem:[%s9] sm:$0x3] %vm492, %v491
    // Predicated region
    $region46: #{tpu_custom_call.1} parent=1 // pred_check
      _
    $region47: #{tpu_custom_call.1} parent=1 // pred_check_branch
      %495 = sbr.rel (0) target = $region49
    $region48: #{tpu_custom_call.1} parent=1 // pred_region
      _
    $region49: #{tpu_custom_call.1} parent=1 // pred_fallthru
      _
    // Predicated region
    $region50: #{tpu_custom_call.1} parent=1 // pred_check
      _
    $region51: #{tpu_custom_call.1} parent=1 // pred_check_branch
      %497 = sbr.rel (0) target = $region53
    $region52: #{tpu_custom_call.1} parent=1 // pred_region
      _
    $region53: #{tpu_custom_call.1} parent=1 // pred_fallthru
      _
    %498 = vsyncpa [#allocation4], 1
    %499 = vsyncpa [#allocation6], 1

</llo_original>
